<compile_context>
chip_gen: v5e
topology: v5e:2x2
jax: 0.10.0
libtpu: 0.0.40
codegen_flags: <defaults>
</compile_context>

<pallas_src>
import numpy as np

import jax
import jax.numpy as jnp
from jax.experimental import pallas as pl
from jax.experimental.pallas import tpu as pltpu


# ----------------------------------------------------------------------------
# Kernel: one (token-tile, out-stripe) block.
# ----------------------------------------------------------------------------
def dmole_kernel(x_ref, h_ref, w_ref, bias_ref, b_ref, out_ref):
    """
    x_ref    : VMEM (tm, D_in)     bf16   token tile
    h_ref    : VMEM (tm, ear_p)    bf16   precomputed x @ A_stacked (j-invariant)
    w_ref    : VMEM (D_in, tn)     bf16   base-layer weight stripe
    bias_ref : VMEM (1, tn)        f32    base-layer bias stripe
    b_ref    : VMEM (ear_p, tn)    bf16   stacked active lora_B * scaling
    out_ref  : VMEM (tm, tn)
    """
    acc = jnp.dot(x_ref[...], w_ref[...], preferred_element_type=jnp.float32)
    acc = acc + bias_ref[...]
    acc = acc + jnp.dot(h_ref[...], b_ref[...], preferred_element_type=jnp.float32)
    out_ref[...] = acc.astype(out_ref.dtype)


def _round_up(n, m):
    return ((n + m - 1) // m) * m


def _pick_tn(d_out):
    """Return (tn, padded_D_out). Lane-dense stripes, bounded VMEM."""
    if d_out <= 512:
        return d_out, d_out                      # single full-width stripe
    dp = _round_up(d_out, 128)
    for cand in (512, 256, 128):
        if dp % cand == 0 and dp // cand >= 2:   # >=2 stripes helps v7x megacore
            return cand, dp
    return 128, dp


# ----------------------------------------------------------------------------
# One-time setup (host).  expert_mask is treated as HOST-STATIC (mirrors
# torch.where(self.expert_masks)[0]); a traced mask would force a retrace.
# ----------------------------------------------------------------------------
def prepare_dmole_params(w, bias, lora_A, lora_B, expert_mask, scaling,
                         compute_dtype=jnp.bfloat16):
    D_in, D_out = w.shape
    _, _, r = lora_A.shape

    mask_np = np.asarray(expert_mask, dtype=bool)
    active = np.nonzero(mask_np)[0]
    if active.size > 0:
        idx = jnp.asarray(active)
        a_act = jnp.take(lora_A, idx, axis=0)                   # (Ea, D_in, r)
        b_act = jnp.take(lora_B, idx, axis=0)                   # (Ea, r, D_out)
        a_st = jnp.transpose(a_act, (1, 0, 2)).reshape(D_in, active.size * r)
        b_st = (b_act.astype(jnp.float32) * jnp.float32(scaling)
                ).reshape(active.size * r, D_out)
    else:
        # No active experts: a single all-zero dummy "expert" keeps one kernel.
        a_st = jnp.zeros((D_in, r), jnp.float32)
        b_st = jnp.zeros((r, D_out), jnp.float32)

    # Pad the stacked LoRA rank dim to a multiple of 128 (zeros contribute 0).
    ear = a_st.shape[1]
    ear_p = _round_up(ear, 128)
    if ear_p != ear:
        a_st = jnp.pad(a_st, ((0, 0), (0, ear_p - ear)))
        b_st = jnp.pad(b_st, ((0, ear_p - ear), (0, 0)))

    # Pad D_out so it always tiles into lane-dense stripes.
    tn, Dp = _pick_tn(D_out)
    w_c = w
    bias_c = bias.reshape(1, D_out)
    if Dp != D_out:
        w_c = jnp.pad(w_c, ((0, 0), (0, Dp - D_out)))
        bias_c = jnp.pad(bias_c, ((0, 0), (0, Dp - D_out)))
        b_st = jnp.pad(b_st, ((0, 0), (0, Dp - D_out)))

    return {
        "w": w_c.astype(compute_dtype),            # (D_in, Dp)
        "bias": bias_c.astype(jnp.float32),        # (1, Dp)
        "a": a_st.astype(compute_dtype),           # (D_in, ear_p)
        "b": b_st.astype(compute_dtype),           # (ear_p, Dp)
        "D_in": D_in, "D_out": D_out, "Dp": Dp, "tn": tn, "ear_p": ear_p,
        "compute_dtype": compute_dtype,
    }


# ----------------------------------------------------------------------------
# Forward pass.
# ----------------------------------------------------------------------------
def dmole_linear(x, params, *, tm_target=512):
    B, S, D_in = x.shape
    assert D_in == params["D_in"]
    D_out, Dp, tn, ear_p = params["D_out"], params["Dp"], params["tn"], params["ear_p"]
    cdt = params["compute_dtype"]
    M = B * S

    x2 = x.reshape(M, D_in).astype(cdt)
    # Hoisted j-invariant LoRA-A matmul: h = x @ A_stacked (tiny, done once).
    h = jnp.dot(x2, params["a"], preferred_element_type=jnp.float32).astype(cdt)

    # Token tile: large (v6e roofline), multiple of 128 when possible (v5e MXU).
    tm = min(tm_target, _round_up(M, 8))
    tm = (tm // 128) * 128 if tm >= 128 else max(8, (tm // 8) * 8)

    num_m = pl.cdiv(M, tm)
    num_n = Dp // tn

    # Grid order: put on the inner (fast) axis whichever operand is cheaper to
    # re-stream from HBM. token-inner => W stripe resident, x/h re-streamed.
    token_inner = (num_m - 1) * Dp >= (num_n - 1) * M
    if token_inner:
        grid = (num_n, num_m)
        x_map = lambda j, i: (i, 0)
        h_map = lambda j, i: (i, 0)
        w_map = lambda j, i: (0, j)
        bias_map = lambda j, i: (0, j)
        b_map = lambda j, i: (0, j)
        out_map = lambda j, i: (i, j)
    else:
        grid = (num_m, num_n)
        x_map = lambda i, j: (i, 0)
        h_map = lambda i, j: (i, 0)
        w_map = lambda i, j: (0, j)
        bias_map = lambda i, j: (0, j)
        b_map = lambda i, j: (0, j)
        out_map = lambda i, j: (i, j)

    isz = jnp.dtype(cdt).itemsize
    osz = jnp.dtype(x.dtype).itemsize
    block_bytes = (tm * D_in * isz + tm * ear_p * isz + D_in * tn * isz
                   + tn * 4 + ear_p * tn * isz + tm * tn * osz)
    # Double-buffered blocks + headroom, capped well under 64 MiB (v7x / TC).
    vmem_limit = int(min(max(2 * block_bytes + (8 << 20), 16 << 20), 56 << 20))

    out = pl.pallas_call(
        dmole_kernel,
        out_shape=jax.ShapeDtypeStruct((M, Dp), x.dtype),
        grid_spec=pl.GridSpec(
            grid=grid,
            in_specs=[
                pl.BlockSpec((tm, D_in), x_map),      # x token tile
                pl.BlockSpec((tm, ear_p), h_map),     # hoisted x @ A_stacked
                pl.BlockSpec((D_in, tn), w_map),      # base W stripe
                pl.BlockSpec((1, tn), bias_map),      # bias stripe
                pl.BlockSpec((ear_p, tn), b_map),     # stacked lora_B * scaling
            ],
            out_specs=pl.BlockSpec((tm, tn), out_map),
        ),
        compiler_params=pltpu.CompilerParams(
            dimension_semantics=("parallel", "parallel"),
            vmem_limit_bytes=vmem_limit),
    )(x2, h, params["w"], params["bias"], params["b"])

    if Dp != D_out:
        out = out[:, :D_out]
    return out.reshape(B, S, D_out)


# ----------------------------------------------------------------------------
# Pure-JAX reference matching the PyTorch forward (per-expert loop).
# ----------------------------------------------------------------------------
def dmole_linear_ref(x, w, bias, lora_A, lora_B, expert_mask, scaling):
    result = jnp.einsum("bsd,do->bso", x, w,
                        preferred_element_type=jnp.float32) + bias
    final = jnp.zeros(result.shape, dtype=jnp.float32)
    for e in range(lora_A.shape[0]):
        h = jnp.einsum("bsd,dr->bsr", x, lora_A[e],
                       preferred_element_type=jnp.float32)
        d = jnp.einsum("bsr,ro->bso", h, lora_B[e],
                       preferred_element_type=jnp.float32)
        final = final + jnp.where(expert_mask[e], 1.0, 0.0) * d
    return result + final * scaling


def _rt(a):  # bf16 round-trip, to compare against the same rounded operands
    return a.astype(jnp.bfloat16).astype(jnp.float32)


def _run_case(key, batch, seq, d_in, d_out, num_experts, r, mask, scaling):
    kx, kw, kb, ka, kbb = jax.random.split(key, 5)
    x = jax.random.normal(kx, (batch, seq, d_in), dtype=jnp.float32)
    w = jax.random.normal(kw, (d_in, d_out), dtype=jnp.float32) * 0.05
    bias = jax.random.normal(kb, (d_out,), dtype=jnp.float32) * 0.1
    # NOTE: the PyTorch module zero-inits lora_B; small random values here so
    # the expert path is actually exercised.
    lora_A = jax.random.normal(ka, (num_experts, d_in, r), dtype=jnp.float32) * 0.05
    lora_B = jax.random.normal(kbb, (num_experts, r, d_out), dtype=jnp.float32) * 0.05

    params = prepare_dmole_params(w, bias, lora_A, lora_B, mask, scaling)
    out = jax.block_until_ready(dmole_linear(x, params))
    assert out.shape == (batch, seq, d_out)

    ref = dmole_linear_ref(_rt(x), _rt(w), bias, _rt(lora_A), _rt(lora_B),
                           mask, scaling)
    rel = jnp.max(jnp.abs(out - ref)) / (jnp.max(jnp.abs(ref)) + 1e-6)
    assert rel < 2e-2, f"mismatch vs bf16-rounded reference (rel={rel})"

    ref32 = dmole_linear_ref(x, w, bias, lora_A, lora_B, mask, scaling)
    rel32 = jnp.max(jnp.abs(out - ref32)) / (jnp.max(jnp.abs(ref32)) + 1e-6)
    assert rel32 < 5e-2, f"mismatch vs f32 reference (rel={rel32})"


if __name__ == "__main__":
    key = jax.random.PRNGKey(0)
    k1, k2 = jax.random.split(key)

    # Small, module-consistent shapes (batch=2, seq=8, hidden=32).
    scaling = 16 / 8                                   # lora_alpha / r
    _run_case(k1, batch=2, seq=8, d_in=32, d_out=32, num_experts=4, r=8,
              mask=jnp.array([True, True, False, True]), scaling=scaling)

    # Medium case exercising D_out striping, multi-token-tile grid and the
    # grid-order selection.
    _run_case(k2, batch=2, seq=512, d_in=256, d_out=640, num_experts=4, r=16,
              mask=jnp.array([True, False, True, True]), scaling=32 / 16)

    print("KERNEL_OK")
</pallas_src>

<mosaic_0001>
module attributes {stable_mosaic.version = 11 : i64} {
  func.func @dmole_kernel(%arg0: i32, %arg1: i32, %arg2: memref<16x32xbf16, #tpu.memory_space<vmem>>, %arg3: memref<16x128xbf16, #tpu.memory_space<vmem>>, %arg4: memref<32x32xbf16, #tpu.memory_space<vmem>>, %arg5: memref<1x32xf32, #tpu.memory_space<vmem>>, %arg6: memref<128x32xbf16, #tpu.memory_space<vmem>>, %arg7: memref<16x32xf32, #tpu.memory_space<vmem>>) attributes {dimension_semantics = [#tpu.dimension_semantics<parallel>, #tpu.dimension_semantics<parallel>], iteration_bounds = array<i64: 1, 1>, scalar_prefetch = 0 : i64, scratch_operands = 0 : i64, tpu.core_type = #tpu.core_type<tc>, window_params = [{transform_indices = @transform_0, window_bounds = array<i64: 16, 32>}, {transform_indices = @transform_1, window_bounds = array<i64: 16, 128>}, {transform_indices = @transform_2, window_bounds = array<i64: 32, 32>}, {transform_indices = @transform_3, window_bounds = array<i64: 1, 32>}, {transform_indices = @transform_4, window_bounds = array<i64: 128, 32>}, {transform_indices = @transform_5, window_bounds = array<i64: 16, 32>}]} {
    %c0 = arith.constant 0 : index
    %c0_0 = arith.constant 0 : index
    %0 = vector.load %arg2[%c0, %c0_0] : memref<16x32xbf16, #tpu.memory_space<vmem>>, vector<16x32xbf16>
    %c0_1 = arith.constant 0 : index
    %c0_2 = arith.constant 0 : index
    %1 = vector.load %arg4[%c0_1, %c0_2] : memref<32x32xbf16, #tpu.memory_space<vmem>>, vector<32x32xbf16>
    %cst = arith.constant dense<0.000000e+00> : vector<16x32xf32>
    %2 = tpu.matmul %0, %1, %cst {dimension_numbers = #tpu.dot_dimension_numbers<[1], [0], [0], [1], [0, 0, 1, 1], [], []>} : vector<16x32xbf16>, vector<32x32xbf16>, vector<16x32xf32> -> vector<16x32xf32>
    %c0_3 = arith.constant 0 : index
    %c0_4 = arith.constant 0 : index
    %3 = vector.load %arg5[%c0_3, %c0_4] : memref<1x32xf32, #tpu.memory_space<vmem>>, vector<1x32xf32>
    %4 = vector.broadcast %3 : vector<1x32xf32> to vector<16x32xf32>
    %5 = arith.addf %2, %4 : vector<16x32xf32>
    %c0_5 = arith.constant 0 : index
    %c0_6 = arith.constant 0 : index
    %6 = vector.load %arg3[%c0_5, %c0_6] : memref<16x128xbf16, #tpu.memory_space<vmem>>, vector<16x128xbf16>
    %c0_7 = arith.constant 0 : index
    %c0_8 = arith.constant 0 : index
    %7 = vector.load %arg6[%c0_7, %c0_8] : memref<128x32xbf16, #tpu.memory_space<vmem>>, vector<128x32xbf16>
    %cst_9 = arith.constant dense<0.000000e+00> : vector<16x32xf32>
    %8 = tpu.matmul %6, %7, %cst_9 {dimension_numbers = #tpu.dot_dimension_numbers<[1], [0], [0], [1], [0, 0, 1, 1], [], []>} : vector<16x128xbf16>, vector<128x32xbf16>, vector<16x32xf32> -> vector<16x32xf32>
    %9 = arith.addf %5, %8 : vector<16x32xf32>
    %c0_10 = arith.constant 0 : index
    %c0_11 = arith.constant 0 : index
    %10 = vector.load %arg7[%c0_10, %c0_11] : memref<16x32xf32, #tpu.memory_space<vmem>>, vector<16x32xf32>
    tpu.vector_store %arg7[%c0_10, %c0_11], %9 {strides = array<i32>} : memref<16x32xf32, #tpu.memory_space<vmem>>, vector<16x32xf32>,
    return
  }
  func.func @transform_0(%arg0: i32, %arg1: i32) -> (i32, i32) {
    %c0_i32 = arith.constant 0 : i32
    %c0_i32_0 = arith.constant 0 : i32
    return %arg1, %c0_i32 : i32, i32
  }
  func.func @transform_1(%arg0: i32, %arg1: i32) -> (i32, i32) {
    %c0_i32 = arith.constant 0 : i32
    %c0_i32_0 = arith.constant 0 : i32
    return %arg1, %c0_i32 : i32, i32
  }
  func.func @transform_2(%arg0: i32, %arg1: i32) -> (i32, i32) {
    %c0_i32 = arith.constant 0 : i32
    %c0_i32_0 = arith.constant 0 : i32
    return %c0_i32, %arg0 : i32, i32
  }
  func.func @transform_3(%arg0: i32, %arg1: i32) -> (i32, i32) {
    %c0_i32 = arith.constant 0 : i32
    %c0_i32_0 = arith.constant 0 : i32
    return %c0_i32, %arg0 : i32, i32
  }
  func.func @transform_4(%arg0: i32, %arg1: i32) -> (i32, i32) {
    %c0_i32 = arith.constant 0 : i32
    %c0_i32_0 = arith.constant 0 : i32
    return %c0_i32, %arg0 : i32, i32
  }
  func.func @transform_5(%arg0: i32, %arg1: i32) -> (i32, i32) {
    %c0_i32 = arith.constant 0 : i32
    return %arg1, %arg0 : i32, i32
  }
}

</mosaic_0001>

<llo_original>
// kernel: tpu_custom_call.1
$region0: #{tpu_custom_call.1}
  #allocation0 [shape = 'u32[]', space=smem, size = 0x4, offset = 0x4, fixed_abs, tag = 'smem constant byte address 0x4 - core index']
  #allocation1 [shape = 'u32[72,128]{1,0:T(1,128)}', space=vmem, size = 0x9000, scoped, tag = 'internal scratch']
  %s0 = inlined_call_operand.vmem [shape: bf16[16,32], index: 0, kind: input, shape index: {}]
  %s1 = inlined_call_operand.vmem [shape: bf16[16,128], index: 1, kind: input, shape index: {}]
  %s2 = inlined_call_operand.vmem [shape: bf16[32,32], index: 2, kind: input, shape index: {}]
  %s3 = inlined_call_operand.vmem [shape: f32[1,32], index: 3, kind: input, shape index: {}]
  %s4 = inlined_call_operand.vmem [shape: bf16[128,32], index: 4, kind: input, shape index: {}]
  %s5 = inlined_call_operand.hbm [shape: f32[16,32], index: 5, kind: output, shape index: {}]
  %s6 = sld [smem:[#allocation0]]
  $region30: #{tpu_custom_call.1} parent=0
    _
  %s8 = ssub.s32 1, %s6
  %s9 = scalar_select 0, %s8, %s6
  $region1: #{tpu_custom_call.1} parent=0
    #allocation2 [shape = 'u8[8192]{0}', space=vmem, size = 0x2000, scoped, tag = 'output window, operand 0, single buffered']
    #allocation3 [shape = 's32[1]{0}', space=sflag, size = 0x4, scoped, tag = 'scoped memory for tpu_custom_call.1']
    %10 = vsyncpa [#allocation3], 0
    // Predicated region
    $region2: #{tpu_custom_call.1} parent=1 // pred_check
      _
    $region3: #{tpu_custom_call.1} parent=1 // pred_check_branch
      %12 = sbr.rel (0) target = $region5
    $region4: #{tpu_custom_call.1} parent=1 // pred_region
      _
    $region5: #{tpu_custom_call.1} parent=1 // pred_fallthru
      _
    // Predicated region
    $region6: #{tpu_custom_call.1} parent=1 // pred_check
      _
    $region7: #{tpu_custom_call.1} parent=1 // pred_check_branch
      %14 = sbr.rel (0) target = $region9
    $region8: #{tpu_custom_call.1} parent=1 // pred_region
      _
    $region9: #{tpu_custom_call.1} parent=1 // pred_fallthru
      _
    // Predicated region
    $region10: #{tpu_custom_call.1} parent=1 // pred_check
      _
    $region11: #{tpu_custom_call.1} parent=1 // pred_check_branch
      %16 = sbr.rel (0) target = $region13
    $region12: #{tpu_custom_call.1} parent=1 // pred_region
      _
    $region13: #{tpu_custom_call.1} parent=1 // pred_fallthru
      _
    // Predicated region
    $region14: #{tpu_custom_call.1} parent=1 // pred_check
      _
    $region15: #{tpu_custom_call.1} parent=1 // pred_check_branch
      %18 = sbr.rel (0) target = $region17
    $region16: #{tpu_custom_call.1} parent=1 // pred_region
      _
    $region17: #{tpu_custom_call.1} parent=1 // pred_fallthru
      _
    // Predicated region
    $region18: #{tpu_custom_call.1} parent=1 // pred_check
      _
    $region19: #{tpu_custom_call.1} parent=1 // pred_check_branch
      %20 = sbr.rel (0) target = $region21
    $region20: #{tpu_custom_call.1} parent=1 // pred_region
      _
    $region21: #{tpu_custom_call.1} parent=1 // pred_fallthru
      _
    %v22 = vld [vmem:[%s0] sm:$0xf]
    %v23 = vld [vmem:[%s0 + $0x4] sm:$0xf]
    %v24 = vld [vmem:[%s2] sm:$0xf]
    %v25 = vld [vmem:[%s2 + $0x4] sm:$0xf]
    %v26 = vld [vmem:[%s2 + $0x8] sm:$0xf]
    %v27 = vld [vmem:[%s2 + $0xc] sm:$0xf]
    %v28 = vld [vmem:[%s3] sm:$0x1]
    %v30 = vperm.slane %v28, 0
    %v34 = vunpack.c.l.b16 %v22
    %v35 = vunpack.c.l.b16 %v23
    %v36 = vpack.c.b16 %v35, %v34
    %v41 = vunpack.c.l.b16 %v24
    %v42 = vunpack.c.l.b16 %v25
    %v43 = vunpack.c.l.b16 %v26
    %v44 = vunpack.c.l.b16 %v27
    %v45 = vpack.c.b16 %v42, %v41
    %v46 = vpack.c.b16 %v44, %v43
    %vm49 = vcmask 261120
    %v51 = vsel %vm49, %v36, 0
    %53 = vmatpush.bf16.msra.mxu0 0
    %54 = vmatpush.bf16.msra.mxu0 0
    %55 = vmatpush.bf16.msra.mxu0 0
    %56 = vmatpush.bf16.msra.mxu0 0
    %57 = vmatpush.bf16.msra.mxu0 0
    %58 = vmatpush.bf16.msra.mxu0 0
    %59 = vmatpush.bf16.msra.mxu0 %v46
    %60 = vmatpush.bf16.msra.mxu0 %v45
    %61 = vmatmul.bf16.gmra.mxu0 %v51
    %v62 = vpop.f32.mrf.mxu0
    %v63 = vadd.f32 %v30, %v62
    %v64 = vpop.f32.mrf.mxu0
    %v65 = vadd.f32 %v30, %v64
    %66 = vdwg.mxu0
    %v67 = vld [vmem:[%s1] sm:$0xf]
    %v68 = vld [vmem:[%s1 + $0x4] sm:$0xf]
    %v69 = vld [vmem:[%s4] sm:$0xf]
    %v70 = vld [vmem:[%s4 + $0x4] sm:$0xf]
    %v71 = vld [vmem:[%s4 + $0x8] sm:$0xf]
    %v72 = vld [vmem:[%s4 + $0xc] sm:$0xf]
    %v73 = vld [vmem:[%s4 + $0x10] sm:$0xf]
    %v74 = vld [vmem:[%s4 + $0x14] sm:$0xf]
    %v75 = vld [vmem:[%s4 + $0x18] sm:$0xf]
    %v76 = vld [vmem:[%s4 + $0x1c] sm:$0xf]
    %v77 = vld [vmem:[%s4 + $0x20] sm:$0xf]
    %v78 = vld [vmem:[%s4 + $0x24] sm:$0xf]
    %v79 = vld [vmem:[%s4 + $0x28] sm:$0xf]
    %v80 = vld [vmem:[%s4 + $0x2c] sm:$0xf]
    %v81 = vld [vmem:[%s4 + $0x30] sm:$0xf]
    %v82 = vld [vmem:[%s4 + $0x34] sm:$0xf]
    %v83 = vld [vmem:[%s4 + $0x38] sm:$0xf]
    %v84 = vld [vmem:[%s4 + $0x3c] sm:$0xf]
    %v87 = vunpack.c.l.b16 %v67
    %v88 = vunpack.c.l.b16 %v68
    %v89 = vpack.c.b16 %v88, %v87
    %v107 = vunpack.c.l.b16 %v69
    %v108 = vunpack.c.l.b16 %v70
    %v109 = vunpack.c.l.b16 %v71
    %v110 = vunpack.c.l.b16 %v72
    %v111 = vunpack.c.l.b16 %v73
    %v112 = vunpack.c.l.b16 %v74
    %v113 = vunpack.c.l.b16 %v75
    %v114 = vunpack.c.l.b16 %v76
    %v115 = vunpack.c.l.b16 %v77
    %v116 = vunpack.c.l.b16 %v78
    %v117 = vunpack.c.l.b16 %v79
    %v118 = vunpack.c.l.b16 %v80
    %v119 = vunpack.c.l.b16 %v81
    %v120 = vunpack.c.l.b16 %v82
    %v121 = vunpack.c.l.b16 %v83
    %v122 = vunpack.c.l.b16 %v84
    %v123 = vpack.c.b16 %v108, %v107
    %v124 = vpack.c.b16 %v110, %v109
    %v125 = vpack.c.b16 %v112, %v111
    %v126 = vpack.c.b16 %v114, %v113
    %v127 = vpack.c.b16 %v116, %v115
    %v128 = vpack.c.b16 %v118, %v117
    %v129 = vpack.c.b16 %v120, %v119
    %v130 = vpack.c.b16 %v122, %v121
    %139 = vmatpush.bf16.msra.mxu0 %v130
    %140 = vmatpush.bf16.msra.mxu0 %v129
    %141 = vmatpush.bf16.msra.mxu0 %v128
    %142 = vmatpush.bf16.msra.mxu0 %v127
    %143 = vmatpush.bf16.msra.mxu0 %v126
    %144 = vmatpush.bf16.msra.mxu0 %v125
    %145 = vmatpush.bf16.msra.mxu0 %v124
    %146 = vmatpush.bf16.msra.mxu0 %v123
    %147 = vmatmul.bf16.gmra.mxu0 %v89
    %v148 = vpop.f32.mrf.mxu0
    %v149 = vadd.f32 0.0, %v148
    %v150 = vpop.f32.mrf.mxu0
    %v151 = vadd.f32 0.0, %v150
    %152 = vdwg.mxu0
    %v153 = vadd.f32 %v63, %v149
    %v154 = vadd.f32 %v65, %v151
    %155 = vst.msk [vmem:[#allocation2] sm:$0xff] %vm49, %v153
    %156 = vst.msk [vmem:[#allocation2 + $0x8] sm:$0xff] %vm49, %v154
    // Predicated region
    $region22: #{tpu_custom_call.1} parent=1 // pred_check
      _
    $region23: #{tpu_custom_call.1} parent=1 // pred_check_branch
      %158 = sbr.rel (0) target = $region25
    $region24: #{tpu_custom_call.1} parent=1 // pred_region
      %160 = vsyncadd [#allocation3], 0
      %s161 = sshll.u32 [#allocation2], 4
      %s162 = int_to_ptr.vmem [resolvable:$true] %s161
      %s163 = sshll.u32 %s5, 4
      %s164 = int_to_ptr.hbm [resolvable:$true] %s163
      %169 = dma.vmem_to_hbm [thread:$0]  %s162, 256, %s164, [#allocation3], 128, 128, 8
    $region25: #{tpu_custom_call.1} parent=1 // pred_fallthru
      _
    // Predicated region
    $region26: #{tpu_custom_call.1} parent=1 // pred_check
      _
    $region27: #{tpu_custom_call.1} parent=1 // pred_check_branch
      %171 = sbr.rel (0) target = $region29
    $region28: #{tpu_custom_call.1} parent=1 // pred_region
      %173 = dma.done [#allocation3], 256
    $region29: #{tpu_custom_call.1} parent=1 // pred_fallthru
      _
    %174 = vsyncpa [#allocation3], 1

</llo_original>
